<compile_context>
chip_gen: v5e
topology: v5e:2x2
jax: 0.10.0
libtpu: 0.0.40
codegen_flags: <defaults>
</compile_context>

<pallas_src>
import functools

import jax
import jax.numpy as jnp
from jax.experimental import pallas as pl
from jax.experimental.pallas import tpu as pltpu


def _channel_gate_kernel(x_ref, w1_ref, b1_ref, w2_ref, b2_ref, out_ref,
                         sum_ref, max_ref, *, hw_t, hw_total, needs_mask):
    # x_ref: (B_t, C, hw_t), w1_ref: (C, Ch), b1_ref: (1, Ch),
    # w2_ref: (Ch, C), b2_ref: (1, C), out_ref: (B_t, C),
    # sum_ref / max_ref: (B_t, C) f32 scratch accumulators.
    hw_idx = pl.program_id(1)

    # ---- init accumulators at the start of each B-tile's reduction pass ----
    @pl.when(hw_idx == 0)
    def _():
        sum_ref[...] = jnp.zeros_like(sum_ref)
        max_ref[...] = jnp.full(max_ref.shape, -jnp.inf, max_ref.dtype)

    # ---- streamed partial reduction over the HW tile ----
    x = x_ref[...]  # (B_t, C, hw_t)
    if needs_mask:
        # Last HW tile may extend past H*W: mask with 0 (sum) / -inf (max).
        col = jax.lax.broadcasted_iota(jnp.int32, x.shape, 2)
        valid = (hw_idx * hw_t + col) < hw_total
        xs = jnp.where(valid, x, 0.0)
        xm = jnp.where(valid, x, -jnp.inf)
    else:
        xs = xm = x

    sum_ref[...] += jnp.sum(xs, axis=-1)
    max_ref[...] = jnp.maximum(max_ref[...], jnp.max(xm, axis=-1))

    # ---- epilogue: shared MLP on stacked [avg; max], sigmoid, store ----
    @pl.when(hw_idx == pl.num_programs(1) - 1)
    def _():
        b_t = sum_ref.shape[0]
        inv_hw = jnp.float32(1.0 / hw_total)
        # Single fused MLP pass over both pooled vectors: (2*B_t, C).
        pooled = jnp.concatenate([sum_ref[...] * inv_hw, max_ref[...]], axis=0)
        h = jnp.dot(pooled, w1_ref[...],
                    preferred_element_type=jnp.float32) + b1_ref[...]
        h = jnp.maximum(h, 0.0)
        raw = jnp.dot(h, w2_ref[...],
                      preferred_element_type=jnp.float32) + b2_ref[...]
        att = raw[:b_t, :] + raw[b_t:, :]          # avg-branch + max-branch
        e = jnp.exp(-att)                           # EUP
        out_ref[...] = pl.reciprocal(1.0 + e, approx=True)  # sigmoid, EUP recip


def _choose_tiles(B, C, HW, elem_bytes=4, max_block_bytes=8 * 1024 * 1024):
    """Pick (B_tile, HW_tile) that satisfy TPU block constraints and VMEM budget."""
    # Output block is (B_t, C): keep B_t == B or a multiple of 8 (sublane rule).
    b_t = 8 if (B % 8 == 0) else B
    # HW tile: full extent for small inputs, else a large lane-aligned tile.
    hw_t = HW if HW <= 2048 else 2048
    # Keep the x block <= ~8 MiB so double-buffered DMA fits v7x's 64 MiB VMEM.
    while b_t * C * hw_t * elem_bytes > max_block_bytes and hw_t % 256 == 0:
        hw_t //= 2
    return b_t, hw_t


def channel_gate(x, w1, b1, w2, b2):
    """x: (B, C, H, W) float32. Returns scale: (B, C, 1, 1) float32."""
    B, C, H, W = x.shape
    Ch = w1.shape[1]
    HW = H * W
    x_flat = x.reshape(B, C, HW)

    b_t, hw_t = _choose_tiles(B, C, HW)
    n_b = B // b_t
    n_hw = pl.cdiv(HW, hw_t)
    needs_mask = (HW % hw_t) != 0

    kernel = functools.partial(
        _channel_gate_kernel, hw_t=hw_t, hw_total=HW, needs_mask=needs_mask)

    out = pl.pallas_call(
        kernel,
        out_shape=jax.ShapeDtypeStruct((B, C), jnp.float32),
        grid=(n_b, n_hw),
        in_specs=[
            # x: streamed over (B tile, HW tile); C stays whole on the sublane axis.
            pl.BlockSpec((b_t, C, hw_t), lambda b, k: (b, 0, k)),
            # MLP parameters: constant block index -> DMA'd once, kept resident.
            pl.BlockSpec((C, Ch), lambda b, k: (0, 0)),
            pl.BlockSpec((1, Ch), lambda b, k: (0, 0)),
            pl.BlockSpec((Ch, C), lambda b, k: (0, 0)),
            pl.BlockSpec((1, C), lambda b, k: (0, 0)),
        ],
        # Output block is resident across the HW reduction axis; written in epilogue.
        out_specs=pl.BlockSpec((b_t, C), lambda b, k: (b, 0)),
        scratch_shapes=[
            pltpu.VMEM((b_t, C), jnp.float32),  # running sum  -> mean
            pltpu.VMEM((b_t, C), jnp.float32),  # running max
        ],
        compiler_params=pltpu.CompilerParams(
            dimension_semantics=("parallel", "arbitrary"),
            vmem_limit_bytes=48 * 1024 * 1024,
        ),
    )(x_flat, w1, b1.reshape(1, Ch), w2, b2.reshape(1, C))

    return out.reshape(B, C, 1, 1)


def channel_gate_reference(x, w1, b1, w2, b2):
    """Pure-JAX reference matching the PyTorch forward."""
    avg_pool = jnp.mean(x, axis=(2, 3))
    max_pool = jnp.max(x, axis=(2, 3))

    def mlp(p):
        h = jnp.maximum(p @ w1 + b1, 0.0)
        return h @ w2 + b2

    att = mlp(avg_pool) + mlp(max_pool)
    B, C = att.shape
    return jax.nn.sigmoid(att).reshape(B, C, 1, 1)


def _make_params(key, C, R):
    Ch = C // R
    kw1, kb1, kw2, kb2 = jax.random.split(key, 4)
    # PyTorch-style Linear init, stored pre-transposed for right-multiplication.
    bound1 = 1.0 / jnp.sqrt(C)
    w1 = jax.random.uniform(kw1, (C, Ch), jnp.float32, -bound1, bound1)
    b1 = jax.random.uniform(kb1, (Ch,), jnp.float32, -bound1, bound1)
    bound2 = 1.0 / jnp.sqrt(Ch)
    w2 = jax.random.uniform(kw2, (Ch, C), jnp.float32, -bound2, bound2)
    b2 = jax.random.uniform(kb2, (C,), jnp.float32, -bound2, bound2)
    return w1, b1, w2, b2


if __name__ == "__main__":
    # Module config: gate_channels=64, reduction_ratio=16 -> hidden = 4
    B, C, H, W = 2, 64, 8, 8
    R = 16

    key = jax.random.PRNGKey(0)
    kx, kx2, kp = jax.random.split(key, 3)
    w1, b1, w2, b2 = _make_params(kp, C, R)

    # Small shape: single HW tile, no masking path.
    x = jax.random.normal(kx, (B, C, H, W), dtype=jnp.float32)
    scale = jax.block_until_ready(channel_gate(x, w1, b1, w2, b2))
    ref = channel_gate_reference(x, w1, b1, w2, b2)
    assert scale.shape == (B, C, 1, 1), scale.shape
    # approx reciprocal in the sigmoid -> slightly relaxed tolerance.
    assert jnp.allclose(scale, ref, atol=2e-3, rtol=2e-3), "mismatch vs reference (small)"

    # Larger spatial extent: exercises the tiled + masked HW reduction path
    # (HW = 2304 > 2048 tile, ragged last tile).
    H2 = W2 = 48
    x2 = jax.random.normal(kx2, (B, C, H2, W2), dtype=jnp.float32)
    scale2 = jax.block_until_ready(channel_gate(x2, w1, b1, w2, b2))
    ref2 = channel_gate_reference(x2, w1, b1, w2, b2)
    assert scale2.shape == (B, C, 1, 1), scale2.shape
    assert jnp.allclose(scale2, ref2, atol=2e-3, rtol=2e-3), "mismatch vs reference (tiled)"

    print("KERNEL_OK")
</pallas_src>

<mosaic_0001>
module attributes {stable_mosaic.version = 11 : i64} {
  func.func @_channel_gate_kernel(%arg0: i32, %arg1: i32, %arg2: memref<2x64x64xf32, #tpu.memory_space<vmem>>, %arg3: memref<64x4xf32, #tpu.memory_space<vmem>>, %arg4: memref<1x4xf32, #tpu.memory_space<vmem>>, %arg5: memref<4x64xf32, #tpu.memory_space<vmem>>, %arg6: memref<1x64xf32, #tpu.memory_space<vmem>>, %arg7: memref<2x64xf32, #tpu.memory_space<vmem>>, %arg8: memref<2x64xf32, #tpu.memory_space<vmem>>, %arg9: memref<2x64xf32, #tpu.memory_space<vmem>>) attributes {dimension_semantics = [#tpu.dimension_semantics<parallel>, #tpu.dimension_semantics<arbitrary>], iteration_bounds = array<i64: 1, 1>, scalar_prefetch = 0 : i64, scratch_operands = 2 : i64, tpu.core_type = #tpu.core_type<tc>, window_params = [{transform_indices = @transform_0, window_bounds = array<i64: 2, 64, 64>}, {pipeline_mode = #tpu.pipeline_mode<synchronous>, transform_indices = @transform_1, window_bounds = array<i64: 64, 4>}, {pipeline_mode = #tpu.pipeline_mode<synchronous>, transform_indices = @transform_2, window_bounds = array<i64: 1, 4>}, {pipeline_mode = #tpu.pipeline_mode<synchronous>, transform_indices = @transform_3, window_bounds = array<i64: 4, 64>}, {pipeline_mode = #tpu.pipeline_mode<synchronous>, transform_indices = @transform_4, window_bounds = array<i64: 1, 64>}, {transform_indices = @transform_5, window_bounds = array<i64: 2, 64>}]} {
    %c0_i32 = arith.constant 0 : i32
    %0 = arith.cmpi eq, %arg1, %c0_i32 : i32
    %1 = arith.extui %0 : i1 to i32
    %c0_i32_0 = arith.constant 0 : i32
    %2 = arith.cmpi ne, %1, %c0_i32_0 : i32
    scf.if %2 {
      %cst_14 = arith.constant 0.000000e+00 : f32
      %15 = vector.broadcast %cst_14 : f32 to vector<2x64xf32>
      %c0_15 = arith.constant 0 : index
      %c0_16 = arith.constant 0 : index
      %16 = vector.load %arg8[%c0_15, %c0_16] : memref<2x64xf32, #tpu.memory_space<vmem>>, vector<2x64xf32>
      tpu.vector_store %arg8[%c0_15, %c0_16], %15 {strides = array<i32>} : memref<2x64xf32, #tpu.memory_space<vmem>>, vector<2x64xf32>,
      %cst_17 = arith.constant 0xFF800000 : f32
      %17 = vector.broadcast %cst_17 : f32 to vector<2x64xf32>
      %c0_18 = arith.constant 0 : index
      %c0_19 = arith.constant 0 : index
      %18 = vector.load %arg9[%c0_18, %c0_19] : memref<2x64xf32, #tpu.memory_space<vmem>>, vector<2x64xf32>
      tpu.vector_store %arg9[%c0_18, %c0_19], %17 {strides = array<i32>} : memref<2x64xf32, #tpu.memory_space<vmem>>, vector<2x64xf32>,
    } else {
    }
    %c0 = arith.constant 0 : index
    %c0_1 = arith.constant 0 : index
    %c0_2 = arith.constant 0 : index
    %3 = vector.load %arg2[%c0, %c0_1, %c0_2] : memref<2x64x64xf32, #tpu.memory_space<vmem>>, vector<2x64x64xf32>
    %c0_3 = arith.constant 0 : index
    %c0_4 = arith.constant 0 : index
    %4 = vector.load %arg8[%c0_3, %c0_4] : memref<2x64xf32, #tpu.memory_space<vmem>>, vector<2x64xf32>
    %cst = arith.constant dense<0.000000e+00> : vector<2x64xf32>
    %5 = vector.multi_reduction <add>, %3, %cst [2] : vector<2x64x64xf32> to vector<2x64xf32>
    %6 = arith.addf %4, %5 : vector<2x64xf32>
    %c0_5 = arith.constant 0 : index
    %c0_6 = arith.constant 0 : index
    %7 = vector.load %arg8[%c0_5, %c0_6] : memref<2x64xf32, #tpu.memory_space<vmem>>, vector<2x64xf32>
    tpu.vector_store %arg8[%c0_5, %c0_6], %6 {strides = array<i32>} : memref<2x64xf32, #tpu.memory_space<vmem>>, vector<2x64xf32>,
    %c0_7 = arith.constant 0 : index
    %c0_8 = arith.constant 0 : index
    %8 = vector.load %arg9[%c0_7, %c0_8] : memref<2x64xf32, #tpu.memory_space<vmem>>, vector<2x64xf32>
    %cst_9 = arith.constant dense<0xFF800000> : vector<2x64xf32>
    %9 = vector.multi_reduction <maximumf>, %3, %cst_9 [2] : vector<2x64x64xf32> to vector<2x64xf32>
    %10 = arith.maximumf %8, %9 : vector<2x64xf32>
    %c0_10 = arith.constant 0 : index
    %c0_11 = arith.constant 0 : index
    %11 = vector.load %arg9[%c0_10, %c0_11] : memref<2x64xf32, #tpu.memory_space<vmem>>, vector<2x64xf32>
    tpu.vector_store %arg9[%c0_10, %c0_11], %10 {strides = array<i32>} : memref<2x64xf32, #tpu.memory_space<vmem>>, vector<2x64xf32>,
    %c0_i32_12 = arith.constant 0 : i32
    %12 = arith.cmpi eq, %arg1, %c0_i32_12 : i32
    %13 = arith.extui %12 : i1 to i32
    %c0_i32_13 = arith.constant 0 : i32
    %14 = arith.cmpi ne, %13, %c0_i32_13 : i32
    scf.if %14 {
      %c0_14 = arith.constant 0 : index
      %c0_15 = arith.constant 0 : index
      %15 = vector.load %arg8[%c0_14, %c0_15] : memref<2x64xf32, #tpu.memory_space<vmem>>, vector<2x64xf32>
      %cst_16 = arith.constant 1.562500e-02 : f32
      %16 = vector.broadcast %cst_16 : f32 to vector<2x64xf32>
      %17 = arith.mulf %15, %16 : vector<2x64xf32>
      %c0_17 = arith.constant 0 : index
      %c0_18 = arith.constant 0 : index
      %18 = vector.load %arg9[%c0_17, %c0_18] : memref<2x64xf32, #tpu.memory_space<vmem>>, vector<2x64xf32>
      %19 = tpu.concatenate %17, %18 in 0 : vector<2x64xf32>, vector<2x64xf32> -> vector<4x64xf32>
      %c0_19 = arith.constant 0 : index
      %c0_20 = arith.constant 0 : index
      %20 = vector.load %arg3[%c0_19, %c0_20] : memref<64x4xf32, #tpu.memory_space<vmem>>, vector<64x4xf32>
      %cst_21 = arith.constant dense<0.000000e+00> : vector<4x4xf32>
      %21 = tpu.matmul %19, %20, %cst_21 {dimension_numbers = #tpu.dot_dimension_numbers<[1], [0], [0], [1], [0, 0, 1, 1], [], []>} : vector<4x64xf32>, vector<64x4xf32>, vector<4x4xf32> -> vector<4x4xf32>
      %c0_22 = arith.constant 0 : index
      %c0_23 = arith.constant 0 : index
      %22 = vector.load %arg4[%c0_22, %c0_23] : memref<1x4xf32, #tpu.memory_space<vmem>>, vector<1x4xf32>
      %23 = vector.broadcast %22 : vector<1x4xf32> to vector<4x4xf32>
      %24 = arith.addf %21, %23 : vector<4x4xf32>
      %cst_24 = arith.constant 0.000000e+00 : f32
      %25 = vector.broadcast %cst_24 : f32 to vector<4x4xf32>
      %26 = arith.maximumf %24, %25 : vector<4x4xf32>
      %c0_25 = arith.constant 0 : index
      %c0_26 = arith.constant 0 : index
      %27 = vector.load %arg5[%c0_25, %c0_26] : memref<4x64xf32, #tpu.memory_space<vmem>>, vector<4x64xf32>
      %cst_27 = arith.constant dense<0.000000e+00> : vector<4x64xf32>
      %28 = tpu.matmul %26, %27, %cst_27 {dimension_numbers = #tpu.dot_dimension_numbers<[1], [0], [0], [1], [0, 0, 1, 1], [], []>} : vector<4x4xf32>, vector<4x64xf32>, vector<4x64xf32> -> vector<4x64xf32>
      %c0_28 = arith.constant 0 : index
      %c0_29 = arith.constant 0 : index
      %29 = vector.load %arg6[%c0_28, %c0_29] : memref<1x64xf32, #tpu.memory_space<vmem>>, vector<1x64xf32>
      %30 = vector.broadcast %29 : vector<1x64xf32> to vector<4x64xf32>
      %31 = arith.addf %28, %30 : vector<4x64xf32>
      %32 = vector.extract_strided_slice %31 {offsets = [0, 0], sizes = [2, 64], strides = [1, 1]} : vector<4x64xf32> to vector<2x64xf32>
      %33 = vector.extract_strided_slice %31 {offsets = [2, 0], sizes = [2, 64], strides = [1, 1]} : vector<4x64xf32> to vector<2x64xf32>
      %34 = arith.addf %32, %33 : vector<2x64xf32>
      %cst_30 = arith.constant 0.000000e+00 : f32
      %35 = vector.broadcast %cst_30 : f32 to vector<2x64xf32>
      %36 = arith.subf %35, %34 : vector<2x64xf32>
      %37 = math.exp %36 : vector<2x64xf32>
      %cst_31 = arith.constant 1.000000e+00 : f32
      %38 = vector.broadcast %cst_31 : f32 to vector<2x64xf32>
      %39 = arith.addf %38, %37 : vector<2x64xf32>
      %40 = tpu.reciprocal %39 {approx = true} : vector<2x64xf32> -> vector<2x64xf32>
      %c0_32 = arith.constant 0 : index
      %c0_33 = arith.constant 0 : index
      %41 = vector.load %arg7[%c0_32, %c0_33] : memref<2x64xf32, #tpu.memory_space<vmem>>, vector<2x64xf32>
      tpu.vector_store %arg7[%c0_32, %c0_33], %40 {strides = array<i32>} : memref<2x64xf32, #tpu.memory_space<vmem>>, vector<2x64xf32>,
    } else {
    }
    return
  }
  func.func @transform_0(%arg0: i32, %arg1: i32) -> (i32, i32, i32) {
    %c0_i32 = arith.constant 0 : i32
    %c0_i32_0 = arith.constant 0 : i32
    return %arg0, %c0_i32, %arg1 : i32, i32, i32
  }
  func.func @transform_1(%arg0: i32, %arg1: i32) -> (i32, i32) {
    %c0_i32 = arith.constant 0 : i32
    %c0_i32_0 = arith.constant 0 : i32
    %c0_i32_1 = arith.constant 0 : i32
    return %c0_i32, %c0_i32_0 : i32, i32
  }
  func.func @transform_2(%arg0: i32, %arg1: i32) -> (i32, i32) {
    %c0_i32 = arith.constant 0 : i32
    %c0_i32_0 = arith.constant 0 : i32
    %c0_i32_1 = arith.constant 0 : i32
    return %c0_i32, %c0_i32_0 : i32, i32
  }
  func.func @transform_3(%arg0: i32, %arg1: i32) -> (i32, i32) {
    %c0_i32 = arith.constant 0 : i32
    %c0_i32_0 = arith.constant 0 : i32
    %c0_i32_1 = arith.constant 0 : i32
    return %c0_i32, %c0_i32_0 : i32, i32
  }
  func.func @transform_4(%arg0: i32, %arg1: i32) -> (i32, i32) {
    %c0_i32 = arith.constant 0 : i32
    %c0_i32_0 = arith.constant 0 : i32
    %c0_i32_1 = arith.constant 0 : i32
    return %c0_i32, %c0_i32_0 : i32, i32
  }
  func.func @transform_5(%arg0: i32, %arg1: i32) -> (i32, i32) {
    %c0_i32 = arith.constant 0 : i32
    %c0_i32_0 = arith.constant 0 : i32
    return %arg0, %c0_i32 : i32, i32
  }
}

</mosaic_0001>

<llo_original>
// kernel: tpu_custom_call.1
$region0: #{tpu_custom_call.1}
  #allocation0 [shape = 'u32[]', space=smem, size = 0x4, offset = 0x4, fixed_abs, tag = 'smem constant byte address 0x4 - core index']
  #allocation1 [shape = 'u32[72,128]{1,0:T(1,128)}', space=vmem, size = 0x9000, scoped, tag = 'internal scratch']
  #allocation2 [shape = 'f32[2,64]{1,0:T(2,128)}', space=vmem, size = 0x400, scoped, tag = 'scratch operand']
  #allocation3 [shape = 'f32[2,64]{1,0:T(2,128)}', space=vmem, size = 0x400, scoped, tag = 'scratch operand']
  %s0 = inlined_call_operand.hbm [shape: f32[2,64,64], index: 0, kind: input, shape index: {}]
  %s1 = inlined_call_operand.vmem [shape: f32[64,4], index: 1, kind: input, shape index: {}]
  %s2 = inlined_call_operand.vmem [shape: f32[1,4], index: 2, kind: input, shape index: {}]
  %s3 = inlined_call_operand.vmem [shape: f32[4,64], index: 3, kind: input, shape index: {}]
  %s4 = inlined_call_operand.vmem [shape: f32[1,64], index: 4, kind: input, shape index: {}]
  %s5 = inlined_call_operand.hbm [shape: f32[2,64], index: 5, kind: output, shape index: {}]
  %s6 = sld [smem:[#allocation0]]
  $region42: #{tpu_custom_call.1} parent=0
    _
  %s8 = ssub.s32 1, %s6
  %s9 = scalar_select 0, %s8, %s6
  $region1: #{tpu_custom_call.1} parent=0
    #allocation4 [shape = 'u8[65536]{0}', space=vmem, size = 0x10000, scoped, tag = 'input window, operand 0, single buffered']
    #allocation5 [shape = 's32[1]{0}', space=sflag, size = 0x4, scoped, tag = 'scoped memory for tpu_custom_call.1']
    #allocation6 [shape = 's32[1]{0}', space=sflag, size = 0x4, scoped, tag = 'scoped memory for tpu_custom_call.1']
    #allocation7 [shape = 'u8[1024]{0}', space=vmem, size = 0x400, scoped, tag = 'output window, operand 0, single buffered']
    %10 = vsyncpa [#allocation5], 0
    %11 = vsyncpa [#allocation6], 0
    // Predicated region
    $region2: #{tpu_custom_call.1} parent=1 // pred_check
      _
    $region3: #{tpu_custom_call.1} parent=1 // pred_check_branch
      %13 = sbr.rel (0) target = $region5
    $region4: #{tpu_custom_call.1} parent=1 // pred_region
      %15 = vsyncadd [#allocation5], 0
      %s16 = sshll.u32 %s0, 4
      %s17 = int_to_ptr.hbm [resolvable:$true] %s16
      %s18 = sshll.u32 [#allocation4], 4
      %s19 = int_to_ptr.vmem [resolvable:$true] %s18
      %24 = dma.hbm_to_vmem [thread:$0]  %s17, 2048, %s19, [#allocation5], 128, 128, 8
    $region5: #{tpu_custom_call.1} parent=1 // pred_fallthru
      _
    // Predicated region
    $region6: #{tpu_custom_call.1} parent=1 // pred_check
      _
    $region7: #{tpu_custom_call.1} parent=1 // pred_check_branch
      %26 = sbr.rel (0) target = $region9
    $region8: #{tpu_custom_call.1} parent=1 // pred_region
      _
    $region9: #{tpu_custom_call.1} parent=1 // pred_fallthru
      _
    // Predicated region
    $region10: #{tpu_custom_call.1} parent=1 // pred_check
      _
    $region11: #{tpu_custom_call.1} parent=1 // pred_check_branch
      %28 = sbr.rel (0) target = $region13
    $region12: #{tpu_custom_call.1} parent=1 // pred_region
      _
    $region13: #{tpu_custom_call.1} parent=1 // pred_fallthru
      _
    // Predicated region
    $region14: #{tpu_custom_call.1} parent=1 // pred_check
      _
    $region15: #{tpu_custom_call.1} parent=1 // pred_check_branch
      %30 = sbr.rel (0) target = $region17
    $region16: #{tpu_custom_call.1} parent=1 // pred_region
      _
    $region17: #{tpu_custom_call.1} parent=1 // pred_fallthru
      _
    // Predicated region
    $region18: #{tpu_custom_call.1} parent=1 // pred_check
      _
    $region19: #{tpu_custom_call.1} parent=1 // pred_check_branch
      %32 = sbr.rel (0) target = $region21
    $region20: #{tpu_custom_call.1} parent=1 // pred_region
      _
    $region21: #{tpu_custom_call.1} parent=1 // pred_fallthru
      _
    // Predicated region
    $region22: #{tpu_custom_call.1} parent=1 // pred_check
      _
    $region23: #{tpu_custom_call.1} parent=1 // pred_check_branch
      %34 = sbr.rel (0) target = $region25
    $region24: #{tpu_custom_call.1} parent=1 // pred_region
      %36 = dma.done [#allocation5], 2048
    $region25: #{tpu_custom_call.1} parent=1 // pred_fallthru
      _
    %p37 = scmp.eq.s32.totalorder 0, 0
    // Predicated region
    $region26: #{tpu_custom_call.1} parent=1 // pred_check
      %p38 = pneg %p37
    $region27: #{tpu_custom_call.1} parent=1 // pred_check_branch
      %40 = sbr.rel (%p38) target = $region29
    $region28: #{tpu_custom_call.1} parent=1 // pred_region
      %vm41 = vcmask 517120
      %42 = vst.msk [vmem:[#allocation2] sm:$0x3] %vm41, 0.0
      %43 = vst.msk [vmem:[#allocation3] sm:$0x3] %vm41, -inf
    $region29: #{tpu_custom_call.1} parent=1 // pred_fallthru
      _
    %v44 = vld [vmem:[#allocation4] sm:$0xff]
    %v45 = vld [vmem:[#allocation4 + $0x8] sm:$0xff]
    %v46 = vld [vmem:[#allocation4 + $0x10] sm:$0xff]
    %v47 = vld [vmem:[#allocation4 + $0x18] sm:$0xff]
    %v48 = vld [vmem:[#allocation4 + $0x20] sm:$0xff]
    %v49 = vld [vmem:[#allocation4 + $0x28] sm:$0xff]
    %v50 = vld [vmem:[#allocation4 + $0x30] sm:$0xff]
    %v51 = vld [vmem:[#allocation4 + $0x38] sm:$0xff]
    %v52 = vld [vmem:[#allocation4 + $0x40] sm:$0xff]
    %v53 = vld [vmem:[#allocation4 + $0x48] sm:$0xff]
    %v54 = vld [vmem:[#allocation4 + $0x50] sm:$0xff]
    %v55 = vld [vmem:[#allocation4 + $0x58] sm:$0xff]
    %v56 = vld [vmem:[#allocation4 + $0x60] sm:$0xff]
    %v57 = vld [vmem:[#allocation4 + $0x68] sm:$0xff]
    %v58 = vld [vmem:[#allocation4 + $0x70] sm:$0xff]
    %v59 = vld [vmem:[#allocation4 + $0x78] sm:$0xff]
    %v60 = vld [vmem:[#allocation2] sm:$0x3]
    %vm61 = vcmask 523264
    %v62 = vsel %vm61, %v44, 0.0
    %63 = vadd.xlane.f32.xlu0 %v62
    %v64 = vpop.xlane.xlu0 %63
    %v65 = vsel %vm61, %v45, 0.0
    %66 = vadd.xlane.f32.xlu0 %v65
    %v67 = vpop.xlane.xlu0 %66
    %v68 = vsel %vm61, %v46, 0.0
    %69 = vadd.xlane.f32.xlu0 %v68
    %v70 = vpop.xlane.xlu0 %69
    %v71 = vsel %vm61, %v47, 0.0
    %72 = vadd.xlane.f32.xlu0 %v71
    %v73 = vpop.xlane.xlu0 %72
    %v74 = vsel %vm61, %v48, 0.0
    %75 = vadd.xlane.f32.xlu0 %v74
    %v76 = vpop.xlane.xlu0 %75
    %v77 = vsel %vm61, %v49, 0.0
    %78 = vadd.xlane.f32.xlu0 %v77
    %v79 = vpop.xlane.xlu0 %78
    %v80 = vsel %vm61, %v50, 0.0
    %81 = vadd.xlane.f32.xlu0 %v80
    %v82 = vpop.xlane.xlu0 %81
    %v83 = vsel %vm61, %v51, 0.0
    %84 = vadd.xlane.f32.xlu0 %v83
    %v85 = vpop.xlane.xlu0 %84
    %v86 = vsel %vm61, %v52, 0.0
    %87 = vadd.xlane.f32.xlu0 %v86
    %v88 = vpop.xlane.xlu0 %87
    %v89 = vsel %vm61, %v53, 0.0
    %90 = vadd.xlane.f32.xlu0 %v89
    %v91 = vpop.xlane.xlu0 %90
    %v92 = vsel %vm61, %v54, 0.0
    %93 = vadd.xlane.f32.xlu0 %v92
    %v94 = vpop.xlane.xlu0 %93
    %v95 = vsel %vm61, %v55, 0.0
    %96 = vadd.xlane.f32.xlu0 %v95
    %v97 = vpop.xlane.xlu0 %96
    %v98 = vsel %vm61, %v56, 0.0
    %99 = vadd.xlane.f32.xlu0 %v98
    %v100 = vpop.xlane.xlu0 %99
    %v101 = vsel %vm61, %v57, 0.0
    %102 = vadd.xlane.f32.xlu0 %v101
    %v103 = vpop.xlane.xlu0 %102
    %v104 = vsel %vm61, %v58, 0.0
    %105 = vadd.xlane.f32.xlu0 %v104
    %v106 = vpop.xlane.xlu0 %105
    %v107 = vsel %vm61, %v59, 0.0
    %108 = vadd.xlane.f32.xlu0 %v107
    %v109 = vpop.xlane.xlu0 %108
    %v126 = vlaneseq
    %v127 = vand.u32 %v126, 127
    %v128 = vperm.slane %v64, %v127
    %v129 = vadd.s32 %v127, 4294967288
    %v130 = vperm.slane %v67, %v129
    %vm131 = vcmask 130112
    %v132 = vsel %vm131, %v130, %v128
    %v133 = vadd.s32 %v127, 4294967280
    %v134 = vperm.slane %v70, %v133
    %vm135 = vcmask 195712
    %v136 = vsel %vm135, %v134, %v132
    %v137 = vadd.s32 %v127, 4294967272
    %v138 = vperm.slane %v73, %v137
    %vm139 = vcmask 261312
    %v140 = vsel %vm139, %v138, %v136
    %v141 = vadd.s32 %v127, 4294967264
    %v142 = vperm.slane %v76, %v141
    %vm143 = vcmask 326912
    %v144 = vsel %vm143, %v142, %v140
    %v145 = vadd.s32 %v127, 4294967256
    %v146 = vperm.slane %v79, %v145
    %vm147 = vcmask 392512
    %v148 = vsel %vm147, %v146, %v144
    %v149 = vadd.s32 %v127, 4294967248
    %v150 = vperm.slane %v82, %v149
    %vm151 = vcmask 458112
    %v152 = vsel %vm151, %v150, %v148
    %v153 = vadd.s32 %v127, 4294967240
    %v154 = vperm.slane %v85, %v153
    %vm155 = vcmask 523712
    %v156 = vsel %vm155, %v154, %v152
    %v157 = vperm.slane %v88, %v127
    %v158 = vperm.slane %v91, %v129
    %v159 = vsel %vm131, %v158, %v157
    %v160 = vperm.slane %v94, %v133
    %v161 = vsel %vm135, %v160, %v159
    %v162 = vperm.slane %v97, %v137
    %v163 = vsel %vm139, %v162, %v161
    %v164 = vperm.slane %v100, %v141
    %v165 = vsel %vm143, %v164, %v163
    %v166 = vperm.slane %v103, %v145
    %v167 = vsel %vm147, %v166, %v165
    %v168 = vperm.slane %v106, %v149
    %v169 = vsel %vm151, %v168, %v167
    %v170 = vperm.slane %v109, %v153
    %v171 = vsel %vm155, %v170, %v169
    %vm172 = vcmask 1041409
    %v173 = vsel %vm172, %v171, %v156
    %v175 = vadd.f32 %v60, %v173
    %vm176 = vcmask 517120
    %177 = vst.msk [vmem:[#allocation2] sm:$0x3] %vm176, %v175
    %v178 = vld [vmem:[#allocation3] sm:$0x3]
    %v179 = vsel %vm61, %v44, -inf
    %180 = vmax.xlane.f32.xlu0 %v179
    %v181 = vpop.xlane.xlu0 %180
    %v182 = vsel %vm61, %v45, -inf
    %183 = vmax.xlane.f32.xlu0 %v182
    %v184 = vpop.xlane.xlu0 %183
    %v185 = vsel %vm61, %v46, -inf
    %186 = vmax.xlane.f32.xlu0 %v185
    %v187 = vpop.xlane.xlu0 %186
    %v188 = vsel %vm61, %v47, -inf
    %189 = vmax.xlane.f32.xlu0 %v188
    %v190 = vpop.xlane.xlu0 %189
    %v191 = vsel %vm61, %v48, -inf
    %192 = vmax.xlane.f32.xlu0 %v191
    %v193 = vpop.xlane.xlu0 %192
    %v194 = vsel %vm61, %v49, -inf
    %195 = vmax.xlane.f32.xlu0 %v194
    %v196 = vpop.xlane.xlu0 %195
    %v197 = vsel %vm61, %v50, -inf
    %198 = vmax.xlane.f32.xlu0 %v197
    %v199 = vpop.xlane.xlu0 %198
    %v200 = vsel %vm61, %v51, -inf
    %201 = vmax.xlane.f32.xlu0 %v200
    %v202 = vpop.xlane.xlu0 %201
    %v203 = vsel %vm61, %v52, -inf
    %204 = vmax.xlane.f32.xlu0 %v203
    %v205 = vpop.xlane.xlu0 %204
    %v206 = vsel %vm61, %v53, -inf
    %207 = vmax.xlane.f32.xlu0 %v206
    %v208 = vpop.xlane.xlu0 %207
    %v209 = vsel %vm61, %v54, -inf
    %210 = vmax.xlane.f32.xlu0 %v209
    %v211 = vpop.xlane.xlu0 %210
    %v212 = vsel %vm61, %v55, -inf
    %213 = vmax.xlane.f32.xlu0 %v212
    %v214 = vpop.xlane.xlu0 %213
    %v215 = vsel %vm61, %v56, -inf
    %216 = vmax.xlane.f32.xlu0 %v215
    %v217 = vpop.xlane.xlu0 %216
    %v218 = vsel %vm61, %v57, -inf
    %219 = vmax.xlane.f32.xlu0 %v218
    %v220 = vpop.xlane.xlu0 %219
    %v221 = vsel %vm61, %v58, -inf
    %222 = vmax.xlane.f32.xlu0 %v221
    %v223 = vpop.xlane.xlu0 %222
    %v224 = vsel %vm61, %v59, -inf
    %225 = vmax.xlane.f32.xlu0 %v224
    %v226 = vpop.xlane.xlu0 %225
    %v243 = vperm.slane %v181, %v127
    %v244 = vperm.slane %v184, %v129
    %v245 = vsel %vm131, %v244, %v243
    %v246 = vperm.slane %v187, %v133
    %v247 = vsel %vm135, %v246, %v245
    %v248 = vperm.slane %v190, %v137
    %v249 = vsel %vm139, %v248, %v247
    %v250 = vperm.slane %v193, %v141
    %v251 = vsel %vm143, %v250, %v249
    %v252 = vperm.slane %v196, %v145
    %v253 = vsel %vm147, %v252, %v251
    %v254 = vperm.slane %v199, %v149
    %v255 = vsel %vm151, %v254, %v253
    %v256 = vperm.slane %v202, %v153
    %v257 = vsel %vm155, %v256, %v255
    %v258 = vperm.slane %v205, %v127
    %v259 = vperm.slane %v208, %v129
    %v260 = vsel %vm131, %v259, %v258
    %v261 = vperm.slane %v211, %v133
    %v262 = vsel %vm135, %v261, %v260
    %v263 = vperm.slane %v214, %v137
    %v264 = vsel %vm139, %v263, %v262
    %v265 = vperm.slane %v217, %v141
    %v266 = vsel %vm143, %v265, %v264
    %v267 = vperm.slane %v220, %v145
    %v268 = vsel %vm147, %v267, %v266
    %v269 = vperm.slane %v223, %v149
    %v270 = vsel %vm151, %v269, %v268
    %v271 = vperm.slane %v226, %v153
    %v272 = vsel %vm155, %v271, %v270
    %v273 = vsel %vm172, %v272, %v257
    %v275 = vmax.f32 %v178, %v273
    %276 = vst.msk [vmem:[#allocation3] sm:$0x3] %vm176, %v275
    // Predicated region
    $region30: #{tpu_custom_call.1} parent=1 // pred_check
      %p277 = pneg %p37
    $region31: #{tpu_custom_call.1} parent=1 // pred_check_branch
      %279 = sbr.rel (%p277) target = $region33
    $region32: #{tpu_custom_call.1} parent=1 // pred_region
      %v280 = vld [vmem:[#allocation2] sm:$0x3]
      %v281 = vmul.f32 %v280, 0.015625
      %v282 = vld [vmem:[#allocation3] sm:$0x3]
      %v284 = vrot.slane %v282, 6
      %vm286 = vcmask 1041408
      %v287 = vsel %vm286, %v281, %v284
      %v288 = vld [vmem:[%s1] sm:$0xff]
      %v289 = vld [vmem:[%s1 + $0x8] sm:$0xff]
      %v290 = vld [vmem:[%s1 + $0x10] sm:$0xff]
      %v291 = vld [vmem:[%s1 + $0x18] sm:$0xff]
      %v292 = vld [vmem:[%s1 + $0x20] sm:$0xff]
      %v293 = vld [vmem:[%s1 + $0x28] sm:$0xff]
      %v294 = vld [vmem:[%s1 + $0x30] sm:$0xff]
      %v295 = vld [vmem:[%s1 + $0x38] sm:$0xff]
      %v296 = vld [vmem:[%s2] sm:$0x1]
      %v298 = vperm.slane %v296, 0
      %v301 = vsel %vm61, %v287, 0
      %303 = vmatpush.msra.mxu0 0.0
      %304 = vmatpush.msra.mxu0 0.0
      %305 = vmatpush.msra.mxu0 0.0
      %306 = vmatpush.msra.mxu0 0.0
      %307 = vmatpush.msra.mxu0 0.0
      %308 = vmatpush.msra.mxu0 0.0
      %309 = vmatpush.msra.mxu0 0.0
      %310 = vmatpush.msra.mxu0 0.0
      %311 = vmatpush.msra.mxu0 %v295
      %312 = vmatpush.msra.mxu0 %v294
      %313 = vmatpush.msra.mxu0 %v293
      %314 = vmatpush.msra.mxu0 %v292
      %315 = vmatpush.msra.mxu0 %v291
      %316 = vmatpush.msra.mxu0 %v290
      %317 = vmatpush.msra.mxu0 %v289
      %318 = vmatpush.msra.mxu0 %v288
      %319 = vmatmul.f32.gmra.mxu0 %v301
      %v320 = vpop.f32.mrf.mxu0
      %v321 = vadd.f32 %v298, %v320
      %322 = vdwg.mxu0
      %v323 = vmax.f32 %v321, 0.0
      %v324 = vld [vmem:[%s3] sm:$0xf]
      %v325 = vld [vmem:[%s4] sm:$0x1]
      %v327 = vperm.slane %v325, 0
      %vm329 = vcmask 31744
      %v331 = vsel %vm329, %v323, 0
      %vm333 = vcmask 1043456
      %v335 = vsel %vm333, %v324, 0
      %337 = vmatpush.msra.mxu0 0.0
      %338 = vmatpush.msra.mxu0 0.0
      %339 = vmatpush.msra.mxu0 0.0
      %340 = vmatpush.msra.mxu0 0.0
      %341 = vmatpush.msra.mxu0 0.0
      %342 = vmatpush.msra.mxu0 0.0
      %343 = vmatpush.msra.mxu0 0.0
      %344 = vmatpush.msra.mxu0 0.0
      %345 = vmatpush.msra.mxu0 0.0
      %346 = vmatpush.msra.mxu0 0.0
      %347 = vmatpush.msra.mxu0 0.0
      %348 = vmatpush.msra.mxu0 0.0
      %349 = vmatpush.msra.mxu0 0.0
      %350 = vmatpush.msra.mxu0 0.0
      %351 = vmatpush.msra.mxu0 0.0
      %352 = vmatpush.msra.mxu0 %v335
      %353 = vmatmul.f32.gmra.mxu0 %v331
      %v354 = vpop.f32.mrf.mxu0
      %v355 = vadd.f32 %v327, %v354
      %356 = vdwg.mxu0
      %v358 = vrot.slane %v355, 2
      %v360 = vadd.f32 %v355, %v358
      %v361 = vsub.f32 0.0, %v360
      %v362 = vmul.f32 %v361, 1.442695
      %v363 = vpow.pop %v362
      %v364 = vadd.f32 %v363, 1.0
      %v365 = vrcp.pop %v364
      %366 = vst.msk [vmem:[#allocation7] sm:$0x3] %vm176, %v365
    $region33: #{tpu_custom_call.1} parent=1 // pred_fallthru
      _
    // Predicated region
    $region34: #{tpu_custom_call.1} parent=1 // pred_check
      _
    $region35: #{tpu_custom_call.1} parent=1 // pred_check_branch
      %368 = sbr.rel (0) target = $region37
    $region36: #{tpu_custom_call.1} parent=1 // pred_region
      %370 = vsyncadd [#allocation6], 0
      %s372 = sshll.u32 [#allocation7], 4
      %s373 = int_to_ptr.vmem [resolvable:$true] %s372
      %s374 = sshll.u32 %s5, 4
      %s375 = int_to_ptr.hbm [resolvable:$true] %s374
      %377 = dma.vmem_to_hbm [thread:$0]  %s373, 32, %s375, [#allocation6]
    $region37: #{tpu_custom_call.1} parent=1 // pred_fallthru
      _
    // Predicated region
    $region38: #{tpu_custom_call.1} parent=1 // pred_check
      _
    $region39: #{tpu_custom_call.1} parent=1 // pred_check_branch
      %379 = sbr.rel (0) target = $region41
    $region40: #{tpu_custom_call.1} parent=1 // pred_region
      %381 = dma.done [#allocation6], 32
    $region41: #{tpu_custom_call.1} parent=1 // pred_fallthru
      _
    %382 = vsyncpa [#allocation5], 1
    %383 = vsyncpa [#allocation6], 1

</llo_original>
